<compile_context>
chip_gen: v5e
topology: v5e:2x2
jax: 0.10.0
libtpu: 0.0.40
codegen_flags: <defaults>
</compile_context>

<pallas_src>
import functools

import numpy as np
import jax
import jax.numpy as jnp
from jax.experimental import pallas as pl
from jax.experimental.pallas import tpu as pltpu


# ----------------------------------------------------------------------------
# Fused Pallas kernel
# ----------------------------------------------------------------------------
def _cross_attn_kernel(qp_ref, kvp_ref,            # patches (bf16)
                       aq_ref, ak_ref, avp_ref,    # folded weights (bf16)
                       bias_ref,                   # [5, E] f32: aq, ak, b_out, gamma, beta
                       o_ref,                      # [1, TQ, E] f32
                       k_s, vpo_s,                 # per-batch caches (bf16 scratch)
                       *, num_heads, head_dim):
    f32 = jnp.float32
    bf16 = jnp.bfloat16
    E = num_heads * head_dim
    qi = pl.program_id(1)

    # ---- K and V@Wo cache: computed once per batch (first query tile),
    #      reused by every other query tile of the same batch. ----
    @pl.when(qi == 0)
    def _():
        kvp = kvp_ref[0]                                               # [Lkv, Kkv2]
        k = jnp.dot(kvp, ak_ref[...], preferred_element_type=f32) + bias_ref[1:2, :]
        for h in range(num_heads):
            k_s[h] = k[:, h * head_dim:(h + 1) * head_dim].astype(bf16)
            vpo_s[h] = jnp.dot(kvp, avp_ref[h],
                               preferred_element_type=f32).astype(bf16)

    # ---- Q for this query tile: conv-proj + in-proj + 1/sqrt(Dh) folded into aq.
    q = jnp.dot(qp_ref[0], aq_ref[...], preferred_element_type=f32) + bias_ref[0:1, :]
    tq = q.shape[0]

    out = jnp.zeros((tq, E), f32)
    # TODO(synk): for large num_heads fold the head loop onto a grid axis
    # instead of statically unrolling it (live-range / vreg pressure).
    for h in range(num_heads):
        qh = q[:, h * head_dim:(h + 1) * head_dim].astype(bf16)        # [TQ, Dh]
        s = jnp.einsum("qd,kd->qk", qh, k_s[h],
                       preferred_element_type=f32)                     # [TQ, Lkv]
        s = s - jnp.max(s, axis=-1, keepdims=True)
        p = jnp.exp(s)
        p = p * pl.reciprocal(jnp.sum(p, axis=-1, keepdims=True), approx=True)
        # out-projection already folded into vpo_s -> one wide GEMM per head.
        out = out + jnp.dot(p.astype(bf16), vpo_s[h],
                            preferred_element_type=f32)                # [TQ, E]

    out = out + bias_ref[2:3, :]    # folded (kv_b/wv bias)@Wo + out-proj bias

    # ---- LayerNorm over embed dim (torch: eps=1e-5, biased variance), f32 math.
    mean = jnp.mean(out, axis=-1, keepdims=True)
    var = jnp.mean((out - mean) ** 2, axis=-1, keepdims=True)
    out = (out - mean) * jax.lax.rsqrt(var + 1e-5)
    out = out * bias_ref[3:4, :] + bias_ref[4:5, :]

    o_ref[0, :, :] = out.astype(o_ref.dtype)


def _pick_tile(n, candidates=(512, 256, 128, 64, 32, 16, 8)):
    for c in candidates:
        if n % c == 0:
            return c
    return n


def fused_cross_attention(q_patches, kv_patches, aq_w, ak_w, avp_w, biases,
                          *, B, Lq, Lkv, num_heads):
    E = biases.shape[-1]
    Dh = E // num_heads
    Kq2 = q_patches.shape[-1]
    Kkv2 = kv_patches.shape[-1]
    TQ = _pick_tile(Lq)
    nq = Lq // TQ

    kernel = functools.partial(_cross_attn_kernel,
                               num_heads=num_heads, head_dim=Dh)

    flops = int(2 * B * Lq * Kq2 * E                      # Q projection
                + 2 * B * Lkv * Kkv2 * E                  # K projection
                + 2 * B * num_heads * Lkv * Kkv2 * E      # folded V@Wo projection
                + 2 * B * num_heads * Lq * Lkv * Dh       # Q K^T
                + 2 * B * num_heads * Lq * Lkv * E        # P (V Wo)
                + 12 * B * Lq * E)                        # softmax / LayerNorm
    bytes_accessed = int(sum(int(a.size) * a.dtype.itemsize
                             for a in (q_patches, kv_patches, aq_w, ak_w,
                                       avp_w, biases))
                         + B * Lq * E * 4)

    return pl.pallas_call(
        kernel,
        out_shape=jax.ShapeDtypeStruct((B, Lq, E), jnp.float32),
        grid=(B, nq),
        in_specs=[
            pl.BlockSpec((1, TQ, Kq2), lambda b, i: (b, i, 0)),     # q patches (tiled)
            pl.BlockSpec((1, Lkv, Kkv2), lambda b, i: (b, 0, 0)),   # kv patches (per batch)
            pl.BlockSpec((Kq2, E), lambda b, i: (0, 0)),            # Aq
            pl.BlockSpec((Kkv2, E), lambda b, i: (0, 0)),           # Ak
            pl.BlockSpec((num_heads, Kkv2, E), lambda b, i: (0, 0, 0)),  # A_{v@wo}
            pl.BlockSpec((5, E), lambda b, i: (0, 0)),              # packed biases/gamma/beta
        ],
        out_specs=pl.BlockSpec((1, TQ, E), lambda b, i: (b, i, 0)),
        scratch_shapes=[
            pltpu.VMEM((num_heads, Lkv, Dh), jnp.bfloat16),         # per-batch K cache
            pltpu.VMEM((num_heads, Lkv, E), jnp.bfloat16),          # per-batch V@Wo cache
        ],
        compiler_params=pltpu.CompilerParams(
            dimension_semantics=("parallel", "arbitrary"),
            vmem_limit_bytes=64 * 1024 * 1024),
        cost_estimate=pl.CostEstimate(
            flops=flops,
            transcendentals=int(B * num_heads * Lq * Lkv),
            bytes_accessed=bytes_accessed),
    )(q_patches, kv_patches, aq_w, ak_w, avp_w, biases)


# ----------------------------------------------------------------------------
# Plain-JAX glue: im2col patch extraction (layout only, no compute)
# ----------------------------------------------------------------------------
def im2col(x, K, S, P):
    """x: [N, C, H, W] -> patches [N*Ho*Wo, C*K*K] ordered (c, kh, kw)."""
    if P:
        x = jnp.pad(x, ((0, 0), (0, 0), (P, P), (P, P)))
    N, C, H, W = x.shape
    Ho = (H - K) // S + 1
    Wo = (W - K) // S + 1
    if K == S and H == Ho * K and W == Wo * K:
        p = (x.reshape(N, C, Ho, K, Wo, K)
             .transpose(0, 2, 4, 1, 3, 5)
             .reshape(N * Ho * Wo, C * K * K))
    else:
        idx_h = (jnp.arange(Ho) * S)[:, None] + jnp.arange(K)[None, :]
        idx_w = (jnp.arange(Wo) * S)[:, None] + jnp.arange(K)[None, :]
        p = x[:, :, idx_h[:, None, :, None], idx_w[None, :, None, :]]
        p = p.transpose(0, 2, 3, 1, 4, 5).reshape(N * Ho * Wo, C * K * K)
    return p, Ho, Wo


# ----------------------------------------------------------------------------
# Forward pass matching CrossAttention.forward
# ----------------------------------------------------------------------------
def cross_attention_forward(x, r_image, p, cfg):
    B, k_x, C, H_x, W_x = x.shape
    B_r, k_r, C_r, H_r, W_r = r_image.shape
    assert B == B_r
    assert C == cfg["in_channels"]
    assert C_r == 1
    # The module's q_feat.view(B, k_x, C, E, Hq, Wq) is only shape-valid for C==1.
    assert C == 1
    E = cfg["embed_dim"]
    kvL = cfg["kv_length"]
    nh = cfg["num_heads"]
    assert E % nh == 0
    Dh = E // nh

    # --- key/value branch patches: rows ordered (b, k_r, h, w) ---
    r_flat = r_image.reshape(B * k_r, 1, H_r, W_r)
    kv_patches, Ho_r, Wo_r = im2col(r_flat, cfg["kernel_size_kv"],
                                    cfg["stride_kv"], cfg["padding_kv"])
    assert Ho_r == kvL and Wo_r == kvL
    Lkv = k_r * kvL * kvL
    Kkv2 = kv_patches.shape[1]
    kv_patches = kv_patches.reshape(B, Lkv, Kkv2)

    # --- query branch patches: permute rows to token order (b, h, w, k_x) ---
    x_flat = x.reshape(B * k_x, C, H_x, W_x)
    q_patches, H_q, W_q = im2col(x_flat, cfg["kernel_size_q"],
                                 cfg["stride_q"], cfg["padding_q"])
    Kq2 = q_patches.shape[1]
    q_patches = (q_patches.reshape(B, k_x, H_q, W_q, Kq2)
                 .transpose(0, 2, 3, 1, 4)
                 .reshape(B, H_q * W_q * k_x, Kq2))
    Lq = C * H_q * W_q * k_x

    # --- host-side weight folding (done once, f32) ---
    scale = 1.0 / float(np.sqrt(Dh))
    qw_mat = p["q_w"].reshape(E, -1).T            # [Kq2, E]
    kvw_mat = p["kv_w"].reshape(E, -1).T          # [Kkv2, E]
    wq = p["in_proj_w"][:E].T
    wk = p["in_proj_w"][E:2 * E].T
    wv = p["in_proj_w"][2 * E:].T
    bq = p["in_proj_b"][:E]
    bk = p["in_proj_b"][E:2 * E]
    bv = p["in_proj_b"][2 * E:]
    wo = p["out_w"].T                             # [E, E]

    aq_w = (qw_mat @ wq) * scale                                  # conv∘Wq (+scale)
    aq_b = (p["q_b"] @ wq + bq) * scale
    ak_w = kvw_mat @ wk                                           # conv∘Wk
    ak_b = p["kv_b"] @ wk + bk
    # conv∘Wv_h∘Wo_h, stacked per head -> [nh, Kkv2, E]
    avp_w = jnp.stack([kvw_mat @ wv[:, h * Dh:(h + 1) * Dh] @ wo[h * Dh:(h + 1) * Dh]
                       for h in range(nh)])
    # V-path biases flow through softmax row-sums (=1): fold into one constant.
    b_out = (p["kv_b"] @ wv + bv) @ wo + p["out_b"]

    biases = jnp.stack([aq_b, ak_b, b_out, p["ln_g"], p["ln_b"]]).astype(jnp.float32)

    bf16 = jnp.bfloat16
    attn = fused_cross_attention(
        q_patches.astype(bf16), kv_patches.astype(bf16),
        aq_w.astype(bf16), ak_w.astype(bf16), avp_w.astype(bf16), biases,
        B=B, Lq=Lq, Lkv=Lkv, num_heads=nh)                        # [B, Lq, E]

    # --- restructure: [B, C, Hq, Wq, k_x, E] -> [B, k_x, C*E, Hq, Wq] ---
    out = (attn.reshape(B, C, H_q, W_q, k_x, E)
           .transpose(0, 4, 1, 5, 2, 3)
           .reshape(B, k_x, C * E, H_q, W_q))
    return out


# ----------------------------------------------------------------------------
# Pure-JAX f32 reference (for correctness check of the Pallas kernel)
# ----------------------------------------------------------------------------
def _ref_mha_ln(q_tok, kv_tok, wq, wk, wv, bq, bk, bv, wo, bo, g, bt, nh):
    B, Lq, E = q_tok.shape
    Dh = E // nh
    Q = q_tok @ wq + bq
    K = kv_tok @ wk + bk
    V = kv_tok @ wv + bv
    Qh = Q.reshape(B, Lq, nh, Dh).transpose(0, 2, 1, 3)
    Kh = K.reshape(B, -1, nh, Dh).transpose(0, 2, 1, 3)
    Vh = V.reshape(B, -1, nh, Dh).transpose(0, 2, 1, 3)
    S = jnp.einsum("bhqd,bhkd->bhqk", Qh, Kh) / np.sqrt(Dh)
    P = jax.nn.softmax(S, axis=-1)
    O = jnp.einsum("bhqk,bhkd->bhqd", P, Vh).transpose(0, 2, 1, 3).reshape(B, Lq, E)
    out = O @ wo + bo
    mean = out.mean(-1, keepdims=True)
    var = ((out - mean) ** 2).mean(-1, keepdims=True)
    return (out - mean) / jnp.sqrt(var + 1e-5) * g + bt


def reference_forward(x, r_image, p, cfg):
    B, k_x, C, H_x, W_x = x.shape
    _, k_r, _, H_r, W_r = r_image.shape
    E, kvL, nh = cfg["embed_dim"], cfg["kv_length"], cfg["num_heads"]

    r_flat = r_image.reshape(B * k_r, 1, H_r, W_r)
    kv_patches, _, _ = im2col(r_flat, cfg["kernel_size_kv"],
                              cfg["stride_kv"], cfg["padding_kv"])
    kv_feat = kv_patches @ p["kv_w"].reshape(E, -1).T + p["kv_b"]
    kv_tok = kv_feat.reshape(B, k_r * kvL * kvL, E)

    x_flat = x.reshape(B * k_x, C, H_x, W_x)
    q_patches, H_q, W_q = im2col(x_flat, cfg["kernel_size_q"],
                                 cfg["stride_q"], cfg["padding_q"])
    q_feat = q_patches @ p["q_w"].reshape(E, -1).T + p["q_b"]
    q_tok = (q_feat.reshape(B, k_x, H_q, W_q, E)
             .transpose(0, 2, 3, 1, 4).reshape(B, C * H_q * W_q * k_x, E))

    wq = p["in_proj_w"][:E].T
    wk = p["in_proj_w"][E:2 * E].T
    wv = p["in_proj_w"][2 * E:].T
    attn = _ref_mha_ln(q_tok, kv_tok, wq, wk, wv,
                       p["in_proj_b"][:E], p["in_proj_b"][E:2 * E],
                       p["in_proj_b"][2 * E:], p["out_w"].T, p["out_b"],
                       p["ln_g"], p["ln_b"], nh)
    return (attn.reshape(B, C, H_q, W_q, k_x, E)
            .transpose(0, 4, 1, 5, 2, 3)
            .reshape(B, k_x, C * E, H_q, W_q))


# ----------------------------------------------------------------------------
# Main
# ----------------------------------------------------------------------------
if __name__ == "__main__":
    cfg = dict(
        embed_dim=32, num_heads=2,
        kernel_size_q=4, stride_q=4, padding_q=0,
        kernel_size_kv=4, stride_kv=4, padding_kv=0,
        kv_length=4, in_channels=1,
    )
    B, k_x, C, H_x, W_x = 2, 2, 1, 16, 16
    k_r, H_r, W_r = 2, 16, 16
    E = cfg["embed_dim"]
    Kq, Kkv = cfg["kernel_size_q"], cfg["kernel_size_kv"]

    key = jax.random.PRNGKey(0)
    keys = jax.random.split(key, 12)
    params = {
        "q_w": 0.1 * jax.random.normal(keys[0], (E, C, Kq, Kq), jnp.float32),
        "q_b": 0.1 * jax.random.normal(keys[1], (E,), jnp.float32),
        "kv_w": 0.1 * jax.random.normal(keys[2], (E, 1, Kkv, Kkv), jnp.float32),
        "kv_b": 0.1 * jax.random.normal(keys[3], (E,), jnp.float32),
        "in_proj_w": 0.1 * jax.random.normal(keys[4], (3 * E, E), jnp.float32),
        "in_proj_b": 0.1 * jax.random.normal(keys[5], (3 * E,), jnp.float32),
        "out_w": 0.1 * jax.random.normal(keys[6], (E, E), jnp.float32),
        "out_b": 0.1 * jax.random.normal(keys[7], (E,), jnp.float32),
        "ln_g": 1.0 + 0.1 * jax.random.normal(keys[8], (E,), jnp.float32),
        "ln_b": 0.1 * jax.random.normal(keys[9], (E,), jnp.float32),
    }

    x = jax.random.normal(keys[10], (B, k_x, C, H_x, W_x), jnp.float32)
    r_image = jax.random.normal(keys[11], (B, k_r, 1, H_r, W_r), jnp.float32)

    out = cross_attention_forward(x, r_image, params, cfg)
    out = jax.block_until_ready(out)

    ref = jax.block_until_ready(reference_forward(x, r_image, params, cfg))

    assert out.shape == (B, k_x, C * E, 4, 4), out.shape
    # Tolerance 2e-2: kernel uses bf16 operands (f32 accumulation / softmax / LN)
    # and an approximate reciprocal in the softmax denominator.
    np.testing.assert_allclose(np.asarray(out), np.asarray(ref),
                               rtol=2e-2, atol=2e-2)
    print("KERNEL_OK")
</pallas_src>

<mosaic_0001>
module attributes {stable_mosaic.version = 11 : i64} {
  func.func @_cross_attn_kernel(%arg0: i32, %arg1: i32, %arg2: memref<1x32x16xbf16, #tpu.memory_space<vmem>>, %arg3: memref<1x32x16xbf16, #tpu.memory_space<vmem>>, %arg4: memref<16x32xbf16, #tpu.memory_space<vmem>>, %arg5: memref<16x32xbf16, #tpu.memory_space<vmem>>, %arg6: memref<2x16x32xbf16, #tpu.memory_space<vmem>>, %arg7: memref<5x32xf32, #tpu.memory_space<vmem>>, %arg8: memref<1x32x32xf32, #tpu.memory_space<vmem>>, %arg9: memref<2x32x16xbf16, #tpu.memory_space<vmem>>, %arg10: memref<2x32x32xbf16, #tpu.memory_space<vmem>>) attributes {dimension_semantics = [#tpu.dimension_semantics<parallel>, #tpu.dimension_semantics<arbitrary>], iteration_bounds = array<i64: 2, 1>, scalar_prefetch = 0 : i64, scratch_operands = 2 : i64, tpu.core_type = #tpu.core_type<tc>, window_params = [{transform_indices = @transform_0, window_bounds = array<i64: 1, 32, 16>}, {transform_indices = @transform_1, window_bounds = array<i64: 1, 32, 16>}, {pipeline_mode = #tpu.pipeline_mode<synchronous>, transform_indices = @transform_2, window_bounds = array<i64: 16, 32>}, {pipeline_mode = #tpu.pipeline_mode<synchronous>, transform_indices = @transform_3, window_bounds = array<i64: 16, 32>}, {pipeline_mode = #tpu.pipeline_mode<synchronous>, transform_indices = @transform_4, window_bounds = array<i64: 2, 16, 32>}, {pipeline_mode = #tpu.pipeline_mode<synchronous>, transform_indices = @transform_5, window_bounds = array<i64: 5, 32>}, {transform_indices = @transform_6, window_bounds = array<i64: 1, 32, 32>}]} {
    %c0_i32 = arith.constant 0 : i32
    %0 = arith.cmpi eq, %arg1, %c0_i32 : i32
    %1 = arith.extui %0 : i1 to i32
    %c0_i32_0 = arith.constant 0 : i32
    %2 = arith.cmpi ne, %1, %c0_i32_0 : i32
    scf.if %2 {
      %c0_38 = arith.constant 0 : index
      %c0_39 = arith.constant 0 : index
      %c0_40 = arith.constant 0 : index
      %81 = vector.load %arg3[%c0_38, %c0_39, %c0_40] : memref<1x32x16xbf16, #tpu.memory_space<vmem>>, vector<1x32x16xbf16>
      %82 = vector.shape_cast %81 : vector<1x32x16xbf16> to vector<32x16xbf16>
      %c0_41 = arith.constant 0 : index
      %c0_42 = arith.constant 0 : index
      %83 = vector.load %arg5[%c0_41, %c0_42] : memref<16x32xbf16, #tpu.memory_space<vmem>>, vector<16x32xbf16>
      %cst_43 = arith.constant dense<0.000000e+00> : vector<32x32xf32>
      %84 = tpu.matmul %82, %83, %cst_43 {dimension_numbers = #tpu.dot_dimension_numbers<[1], [0], [0], [1], [0, 0, 1, 1], [], []>} : vector<32x16xbf16>, vector<16x32xbf16>, vector<32x32xf32> -> vector<32x32xf32>
      %c1_44 = arith.constant 1 : index
      %c0_45 = arith.constant 0 : index
      %85 = vector.load %arg7[%c1_44, %c0_45] : memref<5x32xf32, #tpu.memory_space<vmem>>, vector<1x32xf32>
      %86 = vector.broadcast %85 : vector<1x32xf32> to vector<32x32xf32>
      %87 = arith.addf %84, %86 : vector<32x32xf32>
      %88 = vector.extract_strided_slice %87 {offsets = [0, 0], sizes = [32, 16], strides = [1, 1]} : vector<32x32xf32> to vector<32x16xf32>
      %89 = arith.truncf %88 : vector<32x16xf32> to vector<32x16xbf16>
      %c0_46 = arith.constant 0 : index
      %c0_47 = arith.constant 0 : index
      %c0_48 = arith.constant 0 : index
      %90 = vector.load %arg9[%c0_46, %c0_47, %c0_48] : memref<2x32x16xbf16, #tpu.memory_space<vmem>>, vector<1x32x16xbf16>
      %91 = vector.shape_cast %90 : vector<1x32x16xbf16> to vector<32x16xbf16>
      %92 = vector.shape_cast %89 : vector<32x16xbf16> to vector<1x32x16xbf16>
      tpu.vector_store %arg9[%c0_46, %c0_47, %c0_48], %92 {strides = array<i32>} : memref<2x32x16xbf16, #tpu.memory_space<vmem>>, vector<1x32x16xbf16>,
      %c0_49 = arith.constant 0 : index
      %c0_50 = arith.constant 0 : index
      %c0_51 = arith.constant 0 : index
      %93 = vector.load %arg6[%c0_49, %c0_50, %c0_51] : memref<2x16x32xbf16, #tpu.memory_space<vmem>>, vector<1x16x32xbf16>
      %94 = vector.shape_cast %93 : vector<1x16x32xbf16> to vector<16x32xbf16>
      %cst_52 = arith.constant dense<0.000000e+00> : vector<32x32xf32>
      %95 = tpu.matmul %82, %94, %cst_52 {dimension_numbers = #tpu.dot_dimension_numbers<[1], [0], [0], [1], [0, 0, 1, 1], [], []>} : vector<32x16xbf16>, vector<16x32xbf16>, vector<32x32xf32> -> vector<32x32xf32>
      %96 = arith.truncf %95 : vector<32x32xf32> to vector<32x32xbf16>
      %c0_53 = arith.constant 0 : index
      %c0_54 = arith.constant 0 : index
      %c0_55 = arith.constant 0 : index
      %97 = vector.load %arg10[%c0_53, %c0_54, %c0_55] : memref<2x32x32xbf16, #tpu.memory_space<vmem>>, vector<1x32x32xbf16>
      %98 = vector.shape_cast %97 : vector<1x32x32xbf16> to vector<32x32xbf16>
      %99 = vector.shape_cast %96 : vector<32x32xbf16> to vector<1x32x32xbf16>
      tpu.vector_store %arg10[%c0_53, %c0_54, %c0_55], %99 {strides = array<i32>} : memref<2x32x32xbf16, #tpu.memory_space<vmem>>, vector<1x32x32xbf16>,
      %100 = vector.extract_strided_slice %87 {offsets = [0, 16], sizes = [32, 16], strides = [1, 1]} : vector<32x32xf32> to vector<32x16xf32>
      %101 = arith.truncf %100 : vector<32x16xf32> to vector<32x16xbf16>
      %c1_56 = arith.constant 1 : index
      %c0_57 = arith.constant 0 : index
      %c0_58 = arith.constant 0 : index
      %102 = vector.load %arg9[%c1_56, %c0_57, %c0_58] : memref<2x32x16xbf16, #tpu.memory_space<vmem>>, vector<1x32x16xbf16>
      %103 = vector.shape_cast %102 : vector<1x32x16xbf16> to vector<32x16xbf16>
      %104 = vector.shape_cast %101 : vector<32x16xbf16> to vector<1x32x16xbf16>
      tpu.vector_store %arg9[%c1_56, %c0_57, %c0_58], %104 {strides = array<i32>} : memref<2x32x16xbf16, #tpu.memory_space<vmem>>, vector<1x32x16xbf16>,
      %c1_59 = arith.constant 1 : index
      %c0_60 = arith.constant 0 : index
      %c0_61 = arith.constant 0 : index
      %105 = vector.load %arg6[%c1_59, %c0_60, %c0_61] : memref<2x16x32xbf16, #tpu.memory_space<vmem>>, vector<1x16x32xbf16>
      %106 = vector.shape_cast %105 : vector<1x16x32xbf16> to vector<16x32xbf16>
      %cst_62 = arith.constant dense<0.000000e+00> : vector<32x32xf32>
      %107 = tpu.matmul %82, %106, %cst_62 {dimension_numbers = #tpu.dot_dimension_numbers<[1], [0], [0], [1], [0, 0, 1, 1], [], []>} : vector<32x16xbf16>, vector<16x32xbf16>, vector<32x32xf32> -> vector<32x32xf32>
      %108 = arith.truncf %107 : vector<32x32xf32> to vector<32x32xbf16>
      %c1_63 = arith.constant 1 : index
      %c0_64 = arith.constant 0 : index
      %c0_65 = arith.constant 0 : index
      %109 = vector.load %arg10[%c1_63, %c0_64, %c0_65] : memref<2x32x32xbf16, #tpu.memory_space<vmem>>, vector<1x32x32xbf16>
      %110 = vector.shape_cast %109 : vector<1x32x32xbf16> to vector<32x32xbf16>
      %111 = vector.shape_cast %108 : vector<32x32xbf16> to vector<1x32x32xbf16>
      tpu.vector_store %arg10[%c1_63, %c0_64, %c0_65], %111 {strides = array<i32>} : memref<2x32x32xbf16, #tpu.memory_space<vmem>>, vector<1x32x32xbf16>,
    } else {
    }
    %c0 = arith.constant 0 : index
    %c0_1 = arith.constant 0 : index
    %c0_2 = arith.constant 0 : index
    %3 = vector.load %arg2[%c0, %c0_1, %c0_2] : memref<1x32x16xbf16, #tpu.memory_space<vmem>>, vector<1x32x16xbf16>
    %4 = vector.shape_cast %3 : vector<1x32x16xbf16> to vector<32x16xbf16>
    %c0_3 = arith.constant 0 : index
    %c0_4 = arith.constant 0 : index
    %5 = vector.load %arg4[%c0_3, %c0_4] : memref<16x32xbf16, #tpu.memory_space<vmem>>, vector<16x32xbf16>
    %cst = arith.constant dense<0.000000e+00> : vector<32x32xf32>
    %6 = tpu.matmul %4, %5, %cst {dimension_numbers = #tpu.dot_dimension_numbers<[1], [0], [0], [1], [0, 0, 1, 1], [], []>} : vector<32x16xbf16>, vector<16x32xbf16>, vector<32x32xf32> -> vector<32x32xf32>
    %c0_5 = arith.constant 0 : index
    %c0_6 = arith.constant 0 : index
    %7 = vector.load %arg7[%c0_5, %c0_6] : memref<5x32xf32, #tpu.memory_space<vmem>>, vector<1x32xf32>
    %8 = vector.broadcast %7 : vector<1x32xf32> to vector<32x32xf32>
    %9 = arith.addf %6, %8 : vector<32x32xf32>
    %cst_7 = arith.constant 0.000000e+00 : f32
    %10 = vector.broadcast %cst_7 : f32 to vector<32x32xf32>
    %11 = vector.extract_strided_slice %9 {offsets = [0, 0], sizes = [32, 16], strides = [1, 1]} : vector<32x32xf32> to vector<32x16xf32>
    %12 = arith.truncf %11 : vector<32x16xf32> to vector<32x16xbf16>
    %c0_8 = arith.constant 0 : index
    %c0_9 = arith.constant 0 : index
    %c0_10 = arith.constant 0 : index
    %13 = vector.load %arg9[%c0_8, %c0_9, %c0_10] : memref<2x32x16xbf16, #tpu.memory_space<vmem>>, vector<1x32x16xbf16>
    %14 = vector.shape_cast %13 : vector<1x32x16xbf16> to vector<32x16xbf16>
    "tpu.trace_start"() <{level = 10 : i32, message = "qd,kd->qk"}> : () -> ()
    %cst_11 = arith.constant dense<0.000000e+00> : vector<32x32xf32>
    %15 = tpu.matmul %12, %14, %cst_11 {dimension_numbers = #tpu.dot_dimension_numbers<[1], [1], [0], [0], [0, 0, 1, 0], [], []>} : vector<32x16xbf16>, vector<32x16xbf16>, vector<32x32xf32> -> vector<32x32xf32>
    "tpu.trace_stop"() : () -> ()
    %cst_12 = arith.constant dense<0xFF800000> : vector<32xf32>
    %16 = vector.multi_reduction <maximumf>, %15, %cst_12 [1] : vector<32x32xf32> to vector<32xf32>
    %17 = vector.shape_cast %16 : vector<32xf32> to vector<32x1xf32>
    %18 = vector.broadcast %17 : vector<32x1xf32> to vector<32x32xf32>
    %19 = arith.subf %15, %18 : vector<32x32xf32>
    %20 = math.exp %19 : vector<32x32xf32>
    %cst_13 = arith.constant dense<0.000000e+00> : vector<32xf32>
    %21 = vector.multi_reduction <add>, %20, %cst_13 [1] : vector<32x32xf32> to vector<32xf32>
    %22 = vector.shape_cast %21 : vector<32xf32> to vector<32x1xf32>
    %23 = tpu.reciprocal %22 {approx = true} : vector<32x1xf32> -> vector<32x1xf32>
    %24 = vector.broadcast %23 : vector<32x1xf32> to vector<32x32xf32>
    %25 = arith.mulf %20, %24 : vector<32x32xf32>
    %26 = arith.truncf %25 : vector<32x32xf32> to vector<32x32xbf16>
    %c0_14 = arith.constant 0 : index
    %c0_15 = arith.constant 0 : index
    %c0_16 = arith.constant 0 : index
    %27 = vector.load %arg10[%c0_14, %c0_15, %c0_16] : memref<2x32x32xbf16, #tpu.memory_space<vmem>>, vector<1x32x32xbf16>
    %28 = vector.shape_cast %27 : vector<1x32x32xbf16> to vector<32x32xbf16>
    %cst_17 = arith.constant dense<0.000000e+00> : vector<32x32xf32>
    %29 = tpu.matmul %26, %28, %cst_17 {dimension_numbers = #tpu.dot_dimension_numbers<[1], [0], [0], [1], [0, 0, 1, 1], [], []>} : vector<32x32xbf16>, vector<32x32xbf16>, vector<32x32xf32> -> vector<32x32xf32>
    %30 = arith.addf %10, %29 : vector<32x32xf32>
    %31 = vector.extract_strided_slice %9 {offsets = [0, 16], sizes = [32, 16], strides = [1, 1]} : vector<32x32xf32> to vector<32x16xf32>
    %32 = arith.truncf %31 : vector<32x16xf32> to vector<32x16xbf16>
    %c1 = arith.constant 1 : index
    %c0_18 = arith.constant 0 : index
    %c0_19 = arith.constant 0 : index
    %33 = vector.load %arg9[%c1, %c0_18, %c0_19] : memref<2x32x16xbf16, #tpu.memory_space<vmem>>, vector<1x32x16xbf16>
    %34 = vector.shape_cast %33 : vector<1x32x16xbf16> to vector<32x16xbf16>
    "tpu.trace_start"() <{level = 10 : i32, message = "qd,kd->qk"}> : () -> ()
    %cst_20 = arith.constant dense<0.000000e+00> : vector<32x32xf32>
    %35 = tpu.matmul %32, %34, %cst_20 {dimension_numbers = #tpu.dot_dimension_numbers<[1], [1], [0], [0], [0, 0, 1, 0], [], []>} : vector<32x16xbf16>, vector<32x16xbf16>, vector<32x32xf32> -> vector<32x32xf32>
    "tpu.trace_stop"() : () -> ()
    %cst_21 = arith.constant dense<0xFF800000> : vector<32xf32>
    %36 = vector.multi_reduction <maximumf>, %35, %cst_21 [1] : vector<32x32xf32> to vector<32xf32>
    %37 = vector.shape_cast %36 : vector<32xf32> to vector<32x1xf32>
    %38 = vector.broadcast %37 : vector<32x1xf32> to vector<32x32xf32>
    %39 = arith.subf %35, %38 : vector<32x32xf32>
    %40 = math.exp %39 : vector<32x32xf32>
    %cst_22 = arith.constant dense<0.000000e+00> : vector<32xf32>
    %41 = vector.multi_reduction <add>, %40, %cst_22 [1] : vector<32x32xf32> to vector<32xf32>
    %42 = vector.shape_cast %41 : vector<32xf32> to vector<32x1xf32>
    %43 = tpu.reciprocal %42 {approx = true} : vector<32x1xf32> -> vector<32x1xf32>
    %44 = vector.broadcast %43 : vector<32x1xf32> to vector<32x32xf32>
    %45 = arith.mulf %40, %44 : vector<32x32xf32>
    %46 = arith.truncf %45 : vector<32x32xf32> to vector<32x32xbf16>
    %c1_23 = arith.constant 1 : index
    %c0_24 = arith.constant 0 : index
    %c0_25 = arith.constant 0 : index
    %47 = vector.load %arg10[%c1_23, %c0_24, %c0_25] : memref<2x32x32xbf16, #tpu.memory_space<vmem>>, vector<1x32x32xbf16>
    %48 = vector.shape_cast %47 : vector<1x32x32xbf16> to vector<32x32xbf16>
    %cst_26 = arith.constant dense<0.000000e+00> : vector<32x32xf32>
    %49 = tpu.matmul %46, %48, %cst_26 {dimension_numbers = #tpu.dot_dimension_numbers<[1], [0], [0], [1], [0, 0, 1, 1], [], []>} : vector<32x32xbf16>, vector<32x32xbf16>, vector<32x32xf32> -> vector<32x32xf32>
    %50 = arith.addf %30, %49 : vector<32x32xf32>
    %c2 = arith.constant 2 : index
    %c0_27 = arith.constant 0 : index
    %51 = vector.load %arg7[%c2, %c0_27] : memref<5x32xf32, #tpu.memory_space<vmem>>, vector<1x32xf32>
    %52 = vector.broadcast %51 : vector<1x32xf32> to vector<32x32xf32>
    %53 = arith.addf %50, %52 : vector<32x32xf32>
    %cst_28 = arith.constant dense<0.000000e+00> : vector<32xf32>
    %54 = vector.multi_reduction <add>, %53, %cst_28 [1] : vector<32x32xf32> to vector<32xf32>
    %55 = vector.shape_cast %54 : vector<32xf32> to vector<32x1xf32>
    %cst_29 = arith.constant 3.200000e+01 : f32
    %56 = vector.broadcast %cst_29 : f32 to vector<32x1xf32>
    %57 = arith.divf %55, %56 : vector<32x1xf32>
    %58 = vector.broadcast %57 : vector<32x1xf32> to vector<32x32xf32>
    %59 = arith.subf %53, %58 : vector<32x32xf32>
    %60 = arith.mulf %59, %59 : vector<32x32xf32>
    %cst_30 = arith.constant dense<0.000000e+00> : vector<32xf32>
    %61 = vector.multi_reduction <add>, %60, %cst_30 [1] : vector<32x32xf32> to vector<32xf32>
    %62 = vector.shape_cast %61 : vector<32xf32> to vector<32x1xf32>
    %cst_31 = arith.constant 3.200000e+01 : f32
    %63 = vector.broadcast %cst_31 : f32 to vector<32x1xf32>
    %64 = arith.divf %62, %63 : vector<32x1xf32>
    %65 = vector.broadcast %57 : vector<32x1xf32> to vector<32x32xf32>
    %66 = arith.subf %53, %65 : vector<32x32xf32>
    %cst_32 = arith.constant 9.99999974E-6 : f32
    %67 = vector.broadcast %cst_32 : f32 to vector<32x1xf32>
    %68 = arith.addf %64, %67 : vector<32x1xf32>
    %69 = math.rsqrt %68 : vector<32x1xf32>
    %70 = vector.broadcast %69 : vector<32x1xf32> to vector<32x32xf32>
    %71 = arith.mulf %66, %70 : vector<32x32xf32>
    %c3 = arith.constant 3 : index
    %c0_33 = arith.constant 0 : index
    %72 = vector.load %arg7[%c3, %c0_33] : memref<5x32xf32, #tpu.memory_space<vmem>>, vector<1x32xf32>
    %73 = vector.broadcast %72 : vector<1x32xf32> to vector<32x32xf32>
    %74 = arith.mulf %71, %73 : vector<32x32xf32>
    %c4 = arith.constant 4 : index
    %c0_34 = arith.constant 0 : index
    %75 = vector.load %arg7[%c4, %c0_34] : memref<5x32xf32, #tpu.memory_space<vmem>>, vector<1x32xf32>
    %76 = vector.broadcast %75 : vector<1x32xf32> to vector<32x32xf32>
    %77 = arith.addf %74, %76 : vector<32x32xf32>
    %c0_35 = arith.constant 0 : index
    %c0_36 = arith.constant 0 : index
    %c0_37 = arith.constant 0 : index
    %78 = vector.load %arg8[%c0_35, %c0_36, %c0_37] : memref<1x32x32xf32, #tpu.memory_space<vmem>>, vector<1x32x32xf32>
    %79 = vector.shape_cast %78 : vector<1x32x32xf32> to vector<32x32xf32>
    %80 = vector.shape_cast %77 : vector<32x32xf32> to vector<1x32x32xf32>
    tpu.vector_store %arg8[%c0_35, %c0_36, %c0_37], %80 {strides = array<i32>} : memref<1x32x32xf32, #tpu.memory_space<vmem>>, vector<1x32x32xf32>,
    return
  }
  func.func @transform_0(%arg0: i32, %arg1: i32) -> (i32, i32, i32) {
    %c0_i32 = arith.constant 0 : i32
    %c0_i32_0 = arith.constant 0 : i32
    return %arg0, %arg1, %c0_i32 : i32, i32, i32
  }
  func.func @transform_1(%arg0: i32, %arg1: i32) -> (i32, i32, i32) {
    %c0_i32 = arith.constant 0 : i32
    %c0_i32_0 = arith.constant 0 : i32
    %c0_i32_1 = arith.constant 0 : i32
    return %arg0, %c0_i32, %c0_i32_0 : i32, i32, i32
  }
  func.func @transform_2(%arg0: i32, %arg1: i32) -> (i32, i32) {
    %c0_i32 = arith.constant 0 : i32
    %c0_i32_0 = arith.constant 0 : i32
    %c0_i32_1 = arith.constant 0 : i32
    return %c0_i32, %c0_i32_0 : i32, i32
  }
  func.func @transform_3(%arg0: i32, %arg1: i32) -> (i32, i32) {
    %c0_i32 = arith.constant 0 : i32
    %c0_i32_0 = arith.constant 0 : i32
    %c0_i32_1 = arith.constant 0 : i32
    return %c0_i32, %c0_i32_0 : i32, i32
  }
  func.func @transform_4(%arg0: i32, %arg1: i32) -> (i32, i32, i32) {
    %c0_i32 = arith.constant 0 : i32
    %c0_i32_0 = arith.constant 0 : i32
    %c0_i32_1 = arith.constant 0 : i32
    %c0_i32_2 = arith.constant 0 : i32
    return %c0_i32, %c0_i32_0, %c0_i32_1 : i32, i32, i32
  }
  func.func @transform_5(%arg0: i32, %arg1: i32) -> (i32, i32) {
    %c0_i32 = arith.constant 0 : i32
    %c0_i32_0 = arith.constant 0 : i32
    %c0_i32_1 = arith.constant 0 : i32
    return %c0_i32, %c0_i32_0 : i32, i32
  }
  func.func @transform_6(%arg0: i32, %arg1: i32) -> (i32, i32, i32) {
    %c0_i32 = arith.constant 0 : i32
    %c0_i32_0 = arith.constant 0 : i32
    return %arg0, %arg1, %c0_i32 : i32, i32, i32
  }
}

</mosaic_0001>

<llo_original>
// kernel: tpu_custom_call.1
$region0: #{tpu_custom_call.1}
  #allocation0 [shape = 'u32[]', space=smem, size = 0x4, offset = 0x4, fixed_abs, tag = 'smem constant byte address 0x4 - core index']
  #allocation1 [shape = 'u32[72,128]{1,0:T(1,128)}', space=vmem, size = 0x9000, scoped, tag = 'internal scratch']
  #allocation2 [shape = 'bf16[2,32,16]{2,1,0:T(8,128)(2,1)}', space=vmem, size = 0x4000, scoped, tag = 'scratch operand']
  #allocation3 [shape = 'bf16[2,32,32]{2,1,0:T(8,128)(2,1)}', space=vmem, size = 0x4000, scoped, tag = 'scratch operand']
  %s0 = inlined_call_operand.vmem [shape: bf16[2,32,16], index: 0, kind: input, shape index: {}]
  %s1 = inlined_call_operand.vmem [shape: bf16[2,32,16], index: 1, kind: input, shape index: {}]
  %s2 = inlined_call_operand.vmem [shape: bf16[16,32], index: 2, kind: input, shape index: {}]
  %s3 = inlined_call_operand.vmem [shape: bf16[16,32], index: 3, kind: input, shape index: {}]
  %s4 = inlined_call_operand.vmem [shape: bf16[2,16,32], index: 4, kind: input, shape index: {}]
  %s5 = inlined_call_operand.vmem [shape: f32[5,32], index: 5, kind: input, shape index: {}]
  %s6 = inlined_call_operand.hbm [shape: f32[2,32,32], index: 6, kind: output, shape index: {}]
  %s7 = sld [smem:[#allocation0]]
  $region61: #{tpu_custom_call.1} parent=0
    _
  %s9 = ssub.s32 1, %s7
  %s10 = scalar_select 0, %s9, %s7
  $region1: #{tpu_custom_call.1} parent=0
    #allocation4 [shape = 'u8[32768]{0}', space=vmem, size = 0x8000, scoped, tag = 'output window, operand 0']
    #allocation5 [shape = 's32[2]{0}', space=sflag, size = 0x8, scoped, tag = 'scoped memory for tpu_custom_call.1']
    %11 = vsyncpa [#allocation5], 0
    %s12 = scalar_lea.sflag [#allocation5], 1
    %13 = vsyncpa %s12, 0
    loop: start=0, step=1, limit=4
    $region2: #{tpu_custom_call.1} parent=1 // loop_pre_header
      _
    $region3: #{tpu_custom_call.1} parent=1 // loop_header
      %s15 = sphi 0, %s19
      %p16 = scmp.ge.s32.totalorder %s15, 4
      %s22 = sphi 0, %s34
      %s23 = sphi 0, %s30
      %s24 = sphi 0, %s22
      %s25 = sphi 0, %s23
      %s26 = sphi 0, %s24
      %s27 = sphi 0, %s25
      %s39 = sphi 0, %s41
      %s42 = sphi 0, %s39
      %s43 = sphi 0, %s42
      %s59 = sphi 0, %s43
      %s65 = sphi 0, %s67
      %s68 = sphi 0, %s65
      %s69 = sphi 0, %s68
      %s85 = sphi 0, %s69
      %s89 = sphi 0, %s89
      %s91 = sphi 0, %s89
      %s92 = sphi 0, %s91
      %s106 = sphi 0, %s92
      %s110 = sphi 0, %s110
      %s112 = sphi 0, %s110
      %s113 = sphi 0, %s112
      %s127 = sphi 0, %s113
      %s131 = sphi 0, %s131
      %s133 = sphi 0, %s131
      %s134 = sphi 0, %s133
      %s148 = sphi 0, %s134
      %s152 = sphi 0, %s152
      %s154 = sphi 0, %s152
      %s155 = sphi 0, %s154
      %s169 = sphi 0, %s155
      %s177 = sphi 0, %s179
      %s180 = sphi 0, %s177
      %s181 = sphi 0, %s180
      %s197 = sphi 0, %s181
    $region4: #{tpu_custom_call.1} parent=1 // loop_header_branch
      %18 = sbr.rel (%p16) target = $region8
    $region5: #{tpu_custom_call.1} parent=1 // loop_body
      %s20 = ssub.s32 %s15, 1
      %s21 = ssub.s32 %s15, 2
      %s28 = sadd.s32 1, %s23
      %p29 = scmp.ge.s32.totalorder %s28, 1
      %s30 = scalar_select %p29, 0, %s28
      %s31 = sadd.s32 1, %s22
      %s32 = scalar_select %p29, %s31, %s22
      %p33 = scmp.ge.s32.totalorder %s32, 2
      %s34 = scalar_select %p33, 0, %s32
      %s35 = ssub.s32 %s22, %s34
      %s36 = ssub.s32 %s23, %s30
      %s37 = sor.u32 %s35, %s36
      %p38 = scmp.eq.s32.totalorder %s37, 0
      %s40 = sadd.s32 %s39, 1
      %s41 = scalar_select %p38, %s39, %s40
      %p44 = pneg %p38
      %p45 = scmp.eq.s32.totalorder %s15, 1
      %p46 = por %p44, %p45
      %p47 = scmp.ne.s32.totalorder %s39, %s42
      %p48 = scmp.eq.s32.totalorder %s15, 0
      %p49 = por %p47, %p48
      %p50 = scmp.ne.s32.totalorder %s39, %s42
      %p51 = scmp.eq.s32.totalorder %s20, 1
      %p52 = por %p50, %p51
      %p53 = scmp.ne.s32.totalorder %s42, %s43
      %p54 = scmp.eq.s32.totalorder %s20, 0
      %p55 = por %p53, %p54
      %p56 = scmp.ne.s32.totalorder %s42, %s43
      %p57 = scmp.eq.s32.totalorder %s21, 1
      %p58 = por %p56, %p57
      %p60 = scmp.ne.s32.totalorder %s43, %s59
      %p61 = scmp.eq.s32.totalorder %s21, 0
      %p62 = por %p60, %p61
      %s63 = ssub.s32 %s22, %s34
      %p64 = scmp.eq.s32.totalorder %s63, 0
      %s66 = sadd.s32 %s65, 1
      %s67 = scalar_select %p64, %s65, %s66
      %p70 = pneg %p64
      %p71 = scmp.eq.s32.totalorder %s15, 1
      %p72 = por %p70, %p71
      %p73 = scmp.ne.s32.totalorder %s65, %s68
      %p74 = scmp.eq.s32.totalorder %s15, 0
      %p75 = por %p73, %p74
      %p76 = scmp.ne.s32.totalorder %s65, %s68
      %p77 = scmp.eq.s32.totalorder %s20, 1
      %p78 = por %p76, %p77
      %p79 = scmp.ne.s32.totalorder %s68, %s69
      %p80 = scmp.eq.s32.totalorder %s20, 0
      %p81 = por %p79, %p80
      %p82 = scmp.ne.s32.totalorder %s68, %s69
      %p83 = scmp.eq.s32.totalorder %s21, 1
      %p84 = por %p82, %p83
      %p86 = scmp.ne.s32.totalorder %s69, %s85
      %p87 = scmp.eq.s32.totalorder %s21, 0
      %p88 = por %p86, %p87
      %s90 = sadd.s32 %s89, 1
      %p93 = scmp.eq.s32.totalorder %s15, 1
      %p94 = scmp.ne.s32.totalorder %s89, %s91
      %p95 = scmp.eq.s32.totalorder %s15, 0
      %p96 = por %p94, %p95
      %p97 = scmp.ne.s32.totalorder %s89, %s91
      %p98 = scmp.eq.s32.totalorder %s20, 1
      %p99 = por %p97, %p98
      %p100 = scmp.ne.s32.totalorder %s91, %s92
      %p101 = scmp.eq.s32.totalorder %s20, 0
      %p102 = por %p100, %p101
      %p103 = scmp.ne.s32.totalorder %s91, %s92
      %p104 = scmp.eq.s32.totalorder %s21, 1
      %p105 = por %p103, %p104
      %p107 = scmp.ne.s32.totalorder %s92, %s106
      %p108 = scmp.eq.s32.totalorder %s21, 0
      %p109 = por %p107, %p108
      %s111 = sadd.s32 %s110, 1
      %p114 = scmp.eq.s32.totalorder %s15, 1
      %p115 = scmp.ne.s32.totalorder %s110, %s112
      %p116 = scmp.eq.s32.totalorder %s15, 0
      %p117 = por %p115, %p116
      %p118 = scmp.ne.s32.totalorder %s110, %s112
      %p119 = scmp.eq.s32.totalorder %s20, 1
      %p120 = por %p118, %p119
      %p121 = scmp.ne.s32.totalorder %s112, %s113
      %p122 = scmp.eq.s32.totalorder %s20, 0
      %p123 = por %p121, %p122
      %p124 = scmp.ne.s32.totalorder %s112, %s113
      %p125 = scmp.eq.s32.totalorder %s21, 1
      %p126 = por %p124, %p125
      %p128 = scmp.ne.s32.totalorder %s113, %s127
      %p129 = scmp.eq.s32.totalorder %s21, 0
      %p130 = por %p128, %p129
      %s132 = sadd.s32 %s131, 1
      %p135 = scmp.eq.s32.totalorder %s15, 1
      %p136 = scmp.ne.s32.totalorder %s131, %s133
      %p137 = scmp.eq.s32.totalorder %s15, 0
      %p138 = por %p136, %p137
      %p139 = scmp.ne.s32.totalorder %s131, %s133
      %p140 = scmp.eq.s32.totalorder %s20, 1
      %p141 = por %p139, %p140
      %p142 = scmp.ne.s32.totalorder %s133, %s134
      %p143 = scmp.eq.s32.totalorder %s20, 0
      %p144 = por %p142, %p143
      %p145 = scmp.ne.s32.totalorder %s133, %s134
      %p146 = scmp.eq.s32.totalorder %s21, 1
      %p147 = por %p145, %p146
      %p149 = scmp.ne.s32.totalorder %s134, %s148
      %p150 = scmp.eq.s32.totalorder %s21, 0
      %p151 = por %p149, %p150
      %s153 = sadd.s32 %s152, 1
      %p156 = scmp.eq.s32.totalorder %s15, 1
      %p157 = scmp.ne.s32.totalorder %s152, %s154
      %p158 = scmp.eq.s32.totalorder %s15, 0
      %p159 = por %p157, %p158
      %p160 = scmp.ne.s32.totalorder %s152, %s154
      %p161 = scmp.eq.s32.totalorder %s20, 1
      %p162 = por %p160, %p161
      %p163 = scmp.ne.s32.totalorder %s154, %s155
      %p164 = scmp.eq.s32.totalorder %s20, 0
      %p165 = por %p163, %p164
      %p166 = scmp.ne.s32.totalorder %s154, %s155
      %p167 = scmp.eq.s32.totalorder %s21, 1
      %p168 = por %p166, %p167
      %p170 = scmp.ne.s32.totalorder %s155, %s169
      %p171 = scmp.eq.s32.totalorder %s21, 0
      %p172 = por %p170, %p171
      %s173 = ssub.s32 %s22, %s34
      %s174 = ssub.s32 %s23, %s30
      %s175 = sor.u32 %s173, %s174
      %p176 = scmp.eq.s32.totalorder %s175, 0
      %s178 = sadd.s32 %s177, 1
      %s179 = scalar_select %p176, %s177, %s178
      %p182 = pneg %p176
      %p183 = scmp.eq.s32.totalorder %s15, 1
      %p184 = por %p182, %p183
      %p185 = scmp.ne.s32.totalorder %s177, %s180
      %p186 = scmp.eq.s32.totalorder %s15, 0
      %p187 = por %p185, %p186
      %p188 = scmp.ne.s32.totalorder %s177, %s180
      %p189 = scmp.eq.s32.totalorder %s20, 1
      %p190 = por %p188, %p189
      %p191 = scmp.ne.s32.totalorder %s180, %s181
      %p192 = scmp.eq.s32.totalorder %s20, 0
      %p193 = por %p191, %p192
      %p194 = scmp.ne.s32.totalorder %s180, %s181
      %p195 = scmp.eq.s32.totalorder %s21, 1
      %p196 = por %p194, %p195
      %p198 = scmp.ne.s32.totalorder %s181, %s197
      %p199 = scmp.eq.s32.totalorder %s21, 0
      %p200 = por %p198, %p199
      %p201 = scmp.le.s32.totalorder 1, %s15
      %p202 = scmp.lt.s32.totalorder %s15, 3
      %p203 = pnand %p201, %p202
      %p204 = pneg %p203
      // Predicated region
      $region9: #{tpu_custom_call.1} parent=5 // pred_check
        _
      $region10: #{tpu_custom_call.1} parent=5 // pred_check_branch
        %206 = sbr.rel (%p203) target = $region12
      $region11: #{tpu_custom_call.1} parent=5 // pred_region
        %s207 = ssub.s32 %s15, 1
        // Predicated region
        $region13: #{tpu_custom_call.1} parent=11 // pred_check
          %p208 = pneg %p102
        $region14: #{tpu_custom_call.1} parent=11 // pred_check_branch
          %210 = sbr.rel (%p208) target = $region16
        $region15: #{tpu_custom_call.1} parent=11 // pred_region
          _
        $region16: #{tpu_custom_call.1} parent=11 // pred_fallthru
          _
        // Predicated region
        $region17: #{tpu_custom_call.1} parent=11 // pred_check
          %p211 = pneg %p123
        $region18: #{tpu_custom_call.1} parent=11 // pred_check_branch
          %213 = sbr.rel (%p211) target = $region20
        $region19: #{tpu_custom_call.1} parent=11 // pred_region
          _
        $region20: #{tpu_custom_call.1} parent=11 // pred_fallthru
          _
        // Predicated region
        $region21: #{tpu_custom_call.1} parent=11 // pred_check
          %p214 = pneg %p144
        $region22: #{tpu_custom_call.1} parent=11 // pred_check_branch
          %216 = sbr.rel (%p214) target = $region24
        $region23: #{tpu_custom_call.1} parent=11 // pred_region
          _
        $region24: #{tpu_custom_call.1} parent=11 // pred_fallthru
          _
        // Predicated region
        $region25: #{tpu_custom_call.1} parent=11 // pred_check
          %p217 = pneg %p165
        $region26: #{tpu_custom_call.1} parent=11 // pred_check_branch
          %219 = sbr.rel (%p217) target = $region28
        $region27: #{tpu_custom_call.1} parent=11 // pred_region
          _
        $region28: #{tpu_custom_call.1} parent=11 // pred_fallthru
          _
      $region12: #{tpu_custom_call.1} parent=5 // pred_fallthru
        _
      %p220 = scmp.lt.s32.totalorder %s15, 2
      // Predicated region
      $region29: #{tpu_custom_call.1} parent=5 // pred_check
        %p221 = pneg %p220
      $region30: #{tpu_custom_call.1} parent=5 // pred_check_branch
        %223 = sbr.rel (%p221) target = $region32
      $region31: #{tpu_custom_call.1} parent=5 // pred_region
        // Predicated region
        $region33: #{tpu_custom_call.1} parent=31 // pred_check
          %p224 = pneg %p49
        $region34: #{tpu_custom_call.1} parent=31 // pred_check_branch
          %226 = sbr.rel (%p224) target = $region36
        $region35: #{tpu_custom_call.1} parent=31 // pred_region
          %s227 = smul.u32 4, %s23
          %p228 = scmp.lt.s32.totalorder %s22, 1
          %s229 = scalar_select %p228, %s22, 1
          %p230 = scmp.lt.s32.totalorder %s227, 3
          %s231 = scalar_select %p230, %s227, 3
          %s232 = smul.addr %s229, 4
          %s233 = sadd.s32 %s231, %s232
          %s234 = smul.addr %s233, 4
          %s235 = scalar_lea.vmem %s0, %s234
          %s236 = smul.u32 4, %s23
        $region36: #{tpu_custom_call.1} parent=31 // pred_fallthru
          _
        // Predicated region
        $region37: #{tpu_custom_call.1} parent=31 // pred_check
          %p237 = pneg %p75
        $region38: #{tpu_custom_call.1} parent=31 // pred_check_branch
          %239 = sbr.rel (%p237) target = $region40
        $region39: #{tpu_custom_call.1} parent=31 // pred_region
          %p240 = scmp.lt.s32.totalorder %s22, 1
          %s241 = scalar_select %p240, %s22, 1
          %s242 = smul.addr %s241, 4
          %s243 = smul.addr %s242, 4
          %s244 = scalar_lea.vmem %s1, %s243
        $region40: #{tpu_custom_call.1} parent=31 // pred_fallthru
          _
      $region32: #{tpu_custom_call.1} parent=5 // pred_fallthru
        _
      %p245 = scmp.le.s32.totalorder 1, %s15
      %p246 = scmp.lt.s32.totalorder %s15, 3
      %p247 = pnand %p245, %p246
      %p248 = pneg %p247
      // Predicated region
      $region41: #{tpu_custom_call.1} parent=5 // pred_check
        _
      $region42: #{tpu_custom_call.1} parent=5 // pred_check_branch
        %250 = sbr.rel (%p247) target = $region44
      $region43: #{tpu_custom_call.1} parent=5 // pred_region
        %s251 = ssub.s32 %s15, 1
        %s252 = smul.u32 4, %s25
        %p253 = scmp.lt.s32.totalorder %s24, 1
        %s254 = scalar_select %p253, %s24, 1
        %p255 = scmp.lt.s32.totalorder %s252, 3
        %s256 = scalar_select %p255, %s252, 3
        %s257 = smul.addr %s254, 4
        %s258 = sadd.s32 %s256, %s257
        %s259 = smul.addr %s258, 4
        %s260 = scalar_lea.vmem %s0, %s259
        %p261 = pneg %p55
        %p262 = pneg %p52
        %p263 = scmp.lt.s32.totalorder %s24, 1
        %s264 = scalar_select %p263, %s24, 1
        %s265 = smul.addr %s264, 4
        %s266 = smul.addr %s265, 4
        %s267 = scalar_lea.vmem %s1, %s266
        %p268 = pneg %p81
        %p269 = pneg %p78
        %p270 = pneg %p102
        %p271 = pneg %p99
        %p272 = pneg %p123
        %p273 = pneg %p120
        %p274 = pneg %p144
        %p275 = pneg %p141
        %p276 = pneg %p165
        %p277 = pneg %p162
        %p278 = pneg %p193
        %p279 = pneg %p190
        %s280 = sand.u32 %s180, 1
        %s281 = scalar_lea.sflag [#allocation5], %s280
        %s282 = sand.u32 %s180, 1
        %s283 = smul.addr %s282, 32
        %s284 = scalar_lea.vmem [#allocation4], %s283
        %s285 = smul.u32 4, %s25
        %p286 = scmp.lt.s32.totalorder %s24, 1
        %s287 = scalar_select %p286, %s24, 1
        %p288 = scmp.lt.s32.totalorder %s285, 3
        %s289 = scalar_select %p288, %s285, 3
        %s290 = smul.addr %s287, 4
        %s291 = sadd.s32 %s289, %s290
        %s292 = smul.addr %s291, 4
        %s293 = scalar_lea.vmem %s0, %s292
        %s294 = smul.u32 4, %s25
        %p295 = scmp.lt.s32.totalorder %s24, 1
        %s296 = scalar_select %p295, %s24, 1
        %s297 = smul.addr %s296, 4
        %s298 = smul.addr %s297, 4
        %s299 = scalar_lea.vmem %s1, %s298
        %s300 = smul.u32 4, %s25
        %p302 = scmp.eq.s32.totalorder %s25, 0
        // Predicated region
        $region45: #{tpu_custom_call.1} parent=43 // pred_check
          %p303 = pneg %p302
        $region46: #{tpu_custom_call.1} parent=43 // pred_check_branch
          %305 = sbr.rel (%p303) target = $region48
        $region47: #{tpu_custom_call.1} parent=43 // pred_region
          %v306 = vld [vmem:[%s299] sm:$0xf]
          %v307 = vld [vmem:[%s299 + $0x4] sm:$0xf]
          %v308 = vld [vmem:[%s299 + $0x8] sm:$0xf]
          %v309 = vld [vmem:[%s299 + $0xc] sm:$0xf]
          %v310 = vld [vmem:[%s3] sm:$0xf]
          %v311 = vld [vmem:[%s3 + $0x4] sm:$0xf]
          %v312 = vld [vmem:[%s5 + $0x1] sm:$0x1]
          %v313 = vperm.slane %v312, 0
          %v318 = vunpack.c.l.b16 %v306
          %v319 = vunpack.c.l.b16 %v307
          %v320 = vunpack.c.l.b16 %v308
          %v321 = vunpack.c.l.b16 %v309
          %v322 = vpack.c.b16 %v319, %v318
          %v323 = vpack.c.b16 %v321, %v320
          %v326 = vunpack.c.l.b16 %v310
          %v327 = vunpack.c.l.b16 %v311
          %v328 = vpack.c.b16 %v327, %v326
          %vm330 = vcmask 130048
          %v332 = vsel %vm330, %v322, 0
          %v335 = vsel %vm330, %v323, 0
          %337 = vmatpush.bf16.msra.mxu0 0
          %338 = vmatpush.bf16.msra.mxu0 0
          %339 = vmatpush.bf16.msra.mxu0 0
          %340 = vmatpush.bf16.msra.mxu0 0
          %341 = vmatpush.bf16.msra.mxu0 0
          %342 = vmatpush.bf16.msra.mxu0 0
          %343 = vmatpush.bf16.msra.mxu0 0
          %344 = vmatpush.bf16.msra.mxu0 %v328
          %345 = vmatmul.bf16.gmra.mxu0 %v332
          %v346 = vpop.f32.mrf.mxu0
          %v347 = vadd.f32 %v313, %v346
          %v348 = vpop.f32.mrf.mxu0
          %v349 = vadd.f32 %v313, %v348
          %350 = vmatmul.bf16.gmra.mxu0 %v335
          %v351 = vpop.f32.mrf.mxu0
          %v352 = vadd.f32 %v313, %v351
          %v353 = vpop.f32.mrf.mxu0
          %v354 = vadd.f32 %v313, %v353
          %355 = vdwg.mxu0
          %v356 = vpack.c.bf16 %v347, %v347
          %v357 = vpack.c.bf16 %v349, %v349
          %v358 = vpack.c.bf16 %v352, %v352
          %v359 = vpack.c.bf16 %v354, %v354
          %vm360 = vcmask 125952
          %361 = vst.msk [vmem:[#allocation2] sm:$0xf] %vm360, %v356
          %362 = vst.msk [vmem:[#allocation2 + $0x4] sm:$0xf] %vm360, %v357
          %363 = vst.msk [vmem:[#allocation2 + $0x8] sm:$0xf] %vm360, %v358
          %364 = vst.msk [vmem:[#allocation2 + $0xc] sm:$0xf] %vm360, %v359
          %v365 = vld [vmem:[%s4] sm:$0xf]
          %v366 = vld [vmem:[%s4 + $0x4] sm:$0xf]
          %v369 = vunpack.c.l.b16 %v365
          %v370 = vunpack.c.l.b16 %v366
          %v371 = vpack.c.b16 %v370, %v369
          %373 = vmatpush.bf16.msra.mxu0 0
          %374 = vmatpush.bf16.msra.mxu0 0
          %375 = vmatpush.bf16.msra.mxu0 0
          %376 = vmatpush.bf16.msra.mxu0 0
          %377 = vmatpush.bf16.msra.mxu0 0
          %378 = vmatpush.bf16.msra.mxu0 0
          %379 = vmatpush.bf16.msra.mxu0 0
          %380 = vmatpush.bf16.msra.mxu0 %v371
          %381 = vmatmul.bf16.gmra.mxu0 %v332
          %v382 = vpop.f32.mrf.mxu0
          %v383 = vadd.f32 0.0, %v382
          %v384 = vpop.f32.mrf.mxu0
          %v385 = vadd.f32 0.0, %v384
          %386 = vmatmul.bf16.gmra.mxu0 %v335
          %v387 = vpop.f32.mrf.mxu0
          %v388 = vadd.f32 0.0, %v387
          %v389 = vpop.f32.mrf.mxu0
          %v390 = vadd.f32 0.0, %v389
          %391 = vdwg.mxu0
          %v392 = vpack.c.bf16 %v383, %v383
          %v393 = vpack.c.bf16 %v385, %v385
          %v394 = vpack.c.bf16 %v388, %v388
          %v395 = vpack.c.bf16 %v390, %v390
          %vm396 = vcmask 257024
          %397 = vst.msk [vmem:[#allocation3] sm:$0xf] %vm396, %v392
          %398 = vst.msk [vmem:[#allocation3 + $0x4] sm:$0xf] %vm396, %v393
          %399 = vst.msk [vmem:[#allocation3 + $0x8] sm:$0xf] %vm396, %v394
          %400 = vst.msk [vmem:[#allocation3 + $0xc] sm:$0xf] %vm396, %v395
          %405 = vrot.lane.b32.xlu0 %v356, 112
          %v406 = vpop.permute.xlu0 %405
          %407 = vrot.lane.b32.xlu0 %v357, 112
          %v408 = vpop.permute.xlu0 %407
          %409 = vrot.lane.b32.xlu0 %v358, 112
          %v410 = vpop.permute.xlu0 %409
          %411 = vrot.lane.b32.xlu0 %v359, 112
          %v412 = vpop.permute.xlu0 %411
          %s417 = scalar_lea.vmem [#allocation2], 16
          %418 = vst.msk [vmem:[%s417] sm:$0xf] %vm360, %v406
          %419 = vst.msk [vmem:[%s417 + $0x4] sm:$0xf] %vm360, %v408
          %420 = vst.msk [vmem:[%s417 + $0x8] sm:$0xf] %vm360, %v410
          %421 = vst.msk [vmem:[%s417 + $0xc] sm:$0xf] %vm360, %v412
          %s422 = scalar_lea.vmem %s4, 8
          %v423 = vld [vmem:[%s422] sm:$0xf]
          %v424 = vld [vmem:[%s422 + $0x4] sm:$0xf]
          %v427 = vunpack.c.l.b16 %v423
          %v428 = vunpack.c.l.b16 %v424
          %v429 = vpack.c.b16 %v428, %v427
          %431 = vmatpush.bf16.msra.mxu0 0
          %432 = vmatpush.bf16.msra.mxu0 0
          %433 = vmatpush.bf16.msra.mxu0 0
          %434 = vmatpush.bf16.msra.mxu0 0
          %435 = vmatpush.bf16.msra.mxu0 0
          %436 = vmatpush.bf16.msra.mxu0 0
          %437 = vmatpush.bf16.msra.mxu0 0
          %438 = vmatpush.bf16.msra.mxu0 %v429
          %439 = vmatmul.bf16.gmra.mxu0 %v332
          %v440 = vpop.f32.mrf.mxu0
          %v441 = vadd.f32 0.0, %v440
          %v442 = vpop.f32.mrf.mxu0
          %v443 = vadd.f32 0.0, %v442
          %444 = vmatmul.bf16.gmra.mxu0 %v335
          %v445 = vpop.f32.mrf.mxu0
          %v446 = vadd.f32 0.0, %v445
          %v447 = vpop.f32.mrf.mxu0
          %v448 = vadd.f32 0.0, %v447
          %449 = vdwg.mxu0
          %v450 = vpack.c.bf16 %v441, %v441
          %v451 = vpack.c.bf16 %v443, %v443
          %v452 = vpack.c.bf16 %v446, %v446
          %v453 = vpack.c.bf16 %v448, %v448
          %s454 = scalar_lea.vmem [#allocation3], 16
          %455 = vst.msk [vmem:[%s454] sm:$0xf] %vm396, %v450
          %456 = vst.msk [vmem:[%s454 + $0x4] sm:$0xf] %vm396, %v451
          %457 = vst.msk [vmem:[%s454 + $0x8] sm:$0xf] %vm396, %v452
          %458 = vst.msk [vmem:[%s454 + $0xc] sm:$0xf] %vm396, %v453
        $region48: #{tpu_custom_call.1} parent=43 // pred_fallthru
          _
        %v459 = vld [vmem:[%s293] sm:$0xf]
        %v460 = vld [vmem:[%s293 + $0x4] sm:$0xf]
        %v461 = vld [vmem:[%s293 + $0x8] sm:$0xf]
        %v462 = vld [vmem:[%s293 + $0xc] sm:$0xf]
        %v463 = vld [vmem:[%s2] sm:$0xf]
        %v464 = vld [vmem:[%s2 + $0x4] sm:$0xf]
        %v465 = vld [vmem:[%s5] sm:$0x1]
        %v466 = vperm.slane %v465, 0
        %v471 = vunpack.c.l.b16 %v459
        %v472 = vunpack.c.l.b16 %v460
        %v473 = vunpack.c.l.b16 %v461
        %v474 = vunpack.c.l.b16 %v462
        %v475 = vpack.c.b16 %v472, %v471
        %v476 = vpack.c.b16 %v474, %v473
        %v479 = vunpack.c.l.b16 %v463
        %v480 = vunpack.c.l.b16 %v464
        %v481 = vpack.c.b16 %v480, %v479
        %vm483 = vcmask 130048
        %v485 = vsel %vm483, %v475, 0
        %v488 = vsel %vm483, %v476, 0
        %490 = vmatpush.bf16.msra.mxu0 0
        %491 = vmatpush.bf16.msra.mxu0 0
        %492 = vmatpush.bf16.msra.mxu0 0
        %493 = vmatpush.bf16.msra.mxu0 0
        %494 = vmatpush.bf16.msra.mxu0 0
        %495 = vmatpush.bf16.msra.mxu0 0
        %496 = vmatpush.bf16.msra.mxu0 0
        %497 = vmatpush.bf16.msra.mxu0 %v481
        %498 = vmatmul.bf16.gmra.mxu0 %v485
        %v499 = vpop.f32.mrf.mxu0
        %v500 = vadd.f32 %v466, %v499
        %v501 = vpop.f32.mrf.mxu0
        %v502 = vadd.f32 %v466, %v501
        %503 = vmatmul.bf16.gmra.mxu0 %v488
        %v504 = vpop.f32.mrf.mxu0
        %v505 = vadd.f32 %v466, %v504
        %v506 = vpop.f32.mrf.mxu0
        %v507 = vadd.f32 %v466, %v506
        %508 = vdwg.mxu0
        %v509 = vpack.c.bf16 %v502, %v500
        %v510 = vpack.c.bf16 %v507, %v505
        %v511 = vld [vmem:[#allocation2] sm:$0xf]
        %v512 = vld [vmem:[#allocation2 + $0x4] sm:$0xf]
        %v513 = vld [vmem:[#allocation2 + $0x8] sm:$0xf]
        %v514 = vld [vmem:[#allocation2 + $0xc] sm:$0xf]
        %v519 = vunpack.c.l.b16 %v511
        %v520 = vunpack.c.l.b16 %v512
        %v521 = vunpack.c.l.b16 %v513
        %v522 = vunpack.c.l.b16 %v514
        %v523 = vpack.c.b16 %v520, %v519
        %v524 = vpack.c.b16 %v522, %v521
        %v526 = vsel %vm483, %v509, 0
        %v529 = vsel %vm483, %v510, 0
        %v532 = vsel %vm483, %v523, 0
        %v535 = vsel %vm483, %v524, 0
        %537 = vmatpush.bf16.xpose.msra.mxu0 0
        %538 = vmatpush.bf16.xpose.msra.mxu0 0
        %539 = vmatpush.bf16.xpose.msra.mxu0 0
        %540 = vmatpush.bf16.xpose.msra.mxu0 0
        %541 = vmatpush.bf16.xpose.msra.mxu0 0
        %542 = vmatpush.bf16.xpose.msra.mxu0 0
        %543 = vmatpush.bf16.xpose.msra.mxu0 %v535
        %544 = vmatpush.bf16.xpose.msra.mxu0 %v532
        %545 = vmatmul.bf16.gmra.mxu0 %v526
        %v546 = vpop.f32.mrf.mxu0
        %v547 = vadd.f32 0.0, %v546
        %v548 = vpop.f32.mrf.mxu0
        %v549 = vadd.f32 0.0, %v548
        %550 = vmatmul.bf16.gmra.mxu0 %v529
        %v551 = vpop.f32.mrf.mxu0
        %v552 = vadd.f32 0.0, %v551
        %v553 = vpop.f32.mrf.mxu0
        %v554 = vadd.f32 0.0, %v553
        %555 = vdwg.mxu0
        %vm556 = vcmask 261120
        %v557 = vsel %vm556, %v547, -inf
        %558 = vmax.xlane.f32.xlu0 %v557
        %v559 = vpop.xlane.xlu0 %558
        %v560 = vsel %vm556, %v549, -inf
        %561 = vmax.xlane.f32.xlu0 %v560
        %v562 = vpop.xlane.xlu0 %561
        %v563 = vsel %vm556, %v552, -inf
        %564 = vmax.xlane.f32.xlu0 %v563
        %v565 = vpop.xlane.xlu0 %564
        %v566 = vsel %vm556, %v554, -inf
        %567 = vmax.xlane.f32.xlu0 %v566
        %v568 = vpop.xlane.xlu0 %567
        %v569 = vsub.f32 %v547, %v559
        %v570 = vsub.f32 %v549, %v562
        %v571 = vsub.f32 %v552, %v565
        %v572 = vsub.f32 %v554, %v568
        %v573 = vmul.f32 %v569, 1.442695
        %v574 = vpow.pop %v573
        %v575 = vmul.f32 %v570, 1.442695
        %v576 = vpow.pop %v575
        %v577 = vmul.f32 %v571, 1.442695
        %v578 = vpow.pop %v577
        %v579 = vmul.f32 %v572, 1.442695
        %v580 = vpow.pop %v579
        %v581 = vsel %vm556, %v574, 0.0
        %582 = vadd.xlane.f32.xlu0 %v581
        %v583 = vpop.xlane.xlu0 %582
        %v584 = vsel %vm556, %v576, 0.0
        %585 = vadd.xlane.f32.xlu0 %v584
        %v586 = vpop.xlane.xlu0 %585
        %v587 = vsel %vm556, %v578, 0.0
        %588 = vadd.xlane.f32.xlu0 %v587
        %v589 = vpop.xlane.xlu0 %588
        %v590 = vsel %vm556, %v580, 0.0
        %591 = vadd.xlane.f32.xlu0 %v590
        %v592 = vpop.xlane.xlu0 %591
        %v593 = vrcp.pop %v583
        %v594 = vrcp.pop %v586
        %v595 = vrcp.pop %v589
        %v596 = vrcp.pop %v592
        %v597 = vmul.f32 %v574, %v593
        %v598 = vmul.f32 %v576, %v594
        %v599 = vmul.f32 %v578, %v595
        %v600 = vmul.f32 %v580, %v596
        %v601 = vpack.c.bf16 %v598, %v597
        %v602 = vpack.c.bf16 %v600, %v599
        %v603 = vld [vmem:[#allocation3] sm:$0xf]
        %v604 = vld [vmem:[#allocation3 + $0x4] sm:$0xf]
        %v605 = vld [vmem:[#allocation3 + $0x8] sm:$0xf]
        %v606 = vld [vmem:[#allocation3 + $0xc] sm:$0xf]
        %s607 = scalar_lea.vmem [#allocation2], 16
        %v608 = vld [vmem:[%s607] sm:$0xf]
        %v609 = vld [vmem:[%s607 + $0x4] sm:$0xf]
        %v610 = vld [vmem:[%s607 + $0x8] sm:$0xf]
        %v611 = vld [vmem:[%s607 + $0xc] sm:$0xf]
        %614 = vrot.lane.b32.xlu0 %v509, 112
        %v615 = vpop.permute.xlu0 %614
        %616 = vrot.lane.b32.xlu0 %v510, 112
        %v617 = vpop.permute.xlu0 %616
        %v622 = vunpack.c.l.b16 %v608
        %v623 = vunpack.c.l.b16 %v609
        %v624 = vunpack.c.l.b16 %v610
        %v625 = vunpack.c.l.b16 %v611
        %v626 = vpack.c.b16 %v623, %v622
        %v627 = vpack.c.b16 %v625, %v624
        %v629 = vsel %vm483, %v615, 0
        %v632 = vsel %vm483, %v617, 0
        %v635 = vsel %vm483, %v626, 0
        %v638 = vsel %vm483, %v627, 0
        %640 = vmatpush.bf16.xpose.msra.mxu0 0
        %641 = vmatpush.bf16.xpose.msra.mxu0 0
        %642 = vmatpush.bf16.xpose.msra.mxu0 0
        %643 = vmatpush.bf16.xpose.msra.mxu0 0
        %644 = vmatpush.bf16.xpose.msra.mxu0 0
        %645 = vmatpush.bf16.xpose.msra.mxu0 0
        %646 = vmatpush.bf16.xpose.msra.mxu0 %v638
        %647 = vmatpush.bf16.xpose.msra.mxu0 %v635
        %648 = vmatmul.bf16.gmra.mxu0 %v629
        %v649 = vpop.f32.mrf.mxu0
        %v650 = vadd.f32 0.0, %v649
        %v651 = vpop.f32.mrf.mxu0
        %v652 = vadd.f32 0.0, %v651
        %653 = vmatmul.bf16.gmra.mxu0 %v632
        %v654 = vpop.f32.mrf.mxu0
        %v655 = vadd.f32 0.0, %v654
        %v656 = vpop.f32.mrf.mxu0
        %v657 = vadd.f32 0.0, %v656
        %658 = vdwg.mxu0
        %v659 = vsel %vm556, %v650, -inf
        %660 = vmax.xlane.f32.xlu0 %v659
        %v661 = vpop.xlane.xlu0 %660
        %v662 = vsel %vm556, %v652, -inf
        %663 = vmax.xlane.f32.xlu0 %v662
        %v664 = vpop.xlane.xlu0 %663
        %v665 = vsel %vm556, %v655, -inf
        %666 = vmax.xlane.f32.xlu0 %v665
        %v667 = vpop.xlane.xlu0 %666
        %v668 = vsel %vm556, %v657, -inf
        %669 = vmax.xlane.f32.xlu0 %v668
        %v670 = vpop.xlane.xlu0 %669
        %v671 = vsub.f32 %v650, %v661
        %v672 = vsub.f32 %v652, %v664
        %v673 = vsub.f32 %v655, %v667
        %v674 = vsub.f32 %v657, %v670
        %v675 = vmul.f32 %v671, 1.442695
        %v676 = vpow.pop %v675
        %v677 = vmul.f32 %v672, 1.442695
        %v678 = vpow.pop %v677
        %v679 = vmul.f32 %v673, 1.442695
        %v680 = vpow.pop %v679
        %v681 = vmul.f32 %v674, 1.442695
        %v682 = vpow.pop %v681
        %v683 = vsel %vm556, %v676, 0.0
        %684 = vadd.xlane.f32.xlu0 %v683
        %v685 = vpop.xlane.xlu0 %684
        %v686 = vsel %vm556, %v678, 0.0
        %687 = vadd.xlane.f32.xlu0 %v686
        %v688 = vpop.xlane.xlu0 %687
        %v689 = vsel %vm556, %v680, 0.0
        %690 = vadd.xlane.f32.xlu0 %v689
        %v691 = vpop.xlane.xlu0 %690
        %v692 = vsel %vm556, %v682, 0.0
        %693 = vadd.xlane.f32.xlu0 %v692
        %v694 = vpop.xlane.xlu0 %693
        %v695 = vrcp.pop %v685
        %v696 = vrcp.pop %v688
        %v697 = vrcp.pop %v691
        %v698 = vrcp.pop %v694
        %v699 = vmul.f32 %v676, %v695
        %v700 = vmul.f32 %v678, %v696
        %v701 = vmul.f32 %v680, %v697
        %v702 = vmul.f32 %v682, %v698
        %v703 = vpack.c.bf16 %v700, %v699
        %v704 = vpack.c.bf16 %v702, %v701
        %s705 = scalar_lea.vmem [#allocation3], 16
        %v706 = vld [vmem:[%s705] sm:$0xf]
        %v707 = vld [vmem:[%s705 + $0x4] sm:$0xf]
        %v708 = vld [vmem:[%s705 + $0x8] sm:$0xf]
        %v709 = vld [vmem:[%s705 + $0xc] sm:$0xf]
        %v714 = vunpack.c.l.b16 %v706
        %v715 = vunpack.c.l.b16 %v707
        %v716 = vunpack.c.l.b16 %v708
        %v717 = vunpack.c.l.b16 %v709
        %v718 = vpack.c.b16 %v715, %v714
        %v719 = vpack.c.b16 %v717, %v716
        %v723 = vsel %vm556, %v703, 0
        %v726 = vsel %vm556, %v704, 0
        %728 = vmatpush.bf16.msra.mxu0 0
        %729 = vmatpush.bf16.msra.mxu0 0
        %730 = vmatpush.bf16.msra.mxu0 0
        %731 = vmatpush.bf16.msra.mxu0 0
        %732 = vmatpush.bf16.msra.mxu0 0
        %733 = vmatpush.bf16.msra.mxu0 0
        %734 = vmatpush.bf16.msra.mxu0 %v719
        %735 = vmatpush.bf16.msra.mxu0 %v718
        %736 = vmatmul.bf16.gmra.mxu0 %v723
        %v737 = vpop.f32.mrf.mxu0
        %v738 = vadd.f32 0.0, %v737
        %v739 = vpop.f32.mrf.mxu0
        %v740 = vadd.f32 0.0, %v739
        %741 = vmatmul.bf16.gmra.mxu0 %v726
        %v742 = vpop.f32.mrf.mxu0
        %v743 = vadd.f32 0.0, %v742
        %v744 = vpop.f32.mrf.mxu0
        %v745 = vadd.f32 0.0, %v744
        %746 = vdwg.mxu0
        %v751 = vunpack.c.l.b16 %v603
        %v752 = vunpack.c.l.b16 %v604
        %v753 = vunpack.c.l.b16 %v605
        %v754 = vunpack.c.l.b16 %v606
        %v755 = vpack.c.b16 %v752, %v751
        %v756 = vpack.c.b16 %v754, %v753
        %v760 = vsel %vm556, %v601, 0
        %v763 = vsel %vm556, %v602, 0
        %765 = vmatpush.bf16.msra.mxu0 0
        %766 = vmatpush.bf16.msra.mxu0 0
        %767 = vmatpush.bf16.msra.mxu0 0
        %768 = vmatpush.bf16.msra.mxu0 0
        %769 = vmatpush.bf16.msra.mxu0 0
        %770 = vmatpush.bf16.msra.mxu0 0
        %771 = vmatpush.bf16.msra.mxu0 %v756
        %772 = vmatpush.bf16.msra.mxu0 %v755
        %773 = vmatmul.bf16.gmra.mxu0 %v760
        %v774 = vpop.f32.mrf.mxu0
        %v775 = vadd.f32 %v738, %v774
        %v776 = vpop.f32.mrf.mxu0
        %v777 = vadd.f32 %v740, %v776
        %778 = vmatmul.bf16.gmra.mxu0 %v763
        %v779 = vpop.f32.mrf.mxu0
        %v780 = vadd.f32 %v743, %v779
        %v781 = vpop.f32.mrf.mxu0
        %v782 = vadd.f32 %v745, %v781
        %783 = vdwg.mxu0
        %v784 = vld [vmem:[%s5 + $0x2] sm:$0x1]
        %v785 = vperm.slane %v784, 0
        %v786 = vadd.f32 %v775, %v785
        %v787 = vadd.f32 %v777, %v785
        %v788 = vadd.f32 %v780, %v785
        %v789 = vadd.f32 %v782, %v785
        %v790 = vsel %vm556, %v786, 0.0
        %791 = vadd.xlane.f32.xlu0 %v790
        %v792 = vpop.xlane.xlu0 %791
        %v793 = vsel %vm556, %v787, 0.0
        %794 = vadd.xlane.f32.xlu0 %v793
        %v795 = vpop.xlane.xlu0 %794
        %v796 = vsel %vm556, %v788, 0.0
        %797 = vadd.xlane.f32.xlu0 %v796
        %v798 = vpop.xlane.xlu0 %797
        %v799 = vsel %vm556, %v789, 0.0
        %800 = vadd.xlane.f32.xlu0 %v799
        %v801 = vpop.xlane.xlu0 %800
        %v802 = vrcp.pop 32.0
        %v803 = vmul.f32 32.0, %v802
        %v804 = vsub.f32 1.0, %v803
        %v805 = vmul.f32 %v802, %v804
        %v806 = vadd.f32 %v802, %v805
        %vm807 = vweird.f32 %v802
        %v808 = vsel %vm807, %v802, %v806
        %v809 = vmul.f32 %v792, %v808
        %v810 = vmul.f32 %v795, %v808
        %v811 = vmul.f32 %v798, %v808
        %v812 = vmul.f32 %v801, %v808
        %v813 = vsub.f32 %v786, %v809
        %v814 = vsub.f32 %v787, %v810
        %v815 = vsub.f32 %v788, %v811
        %v816 = vsub.f32 %v789, %v812
        %v817 = vmul.f32 %v813, %v813
        %v818 = vmul.f32 %v814, %v814
        %v819 = vmul.f32 %v815, %v815
        %v820 = vmul.f32 %v816, %v816
        %v821 = vsel %vm556, %v817, 0.0
        %822 = vadd.xlane.f32.xlu0 %v821
        %v823 = vpop.xlane.xlu0 %822
        %v824 = vsel %vm556, %v818, 0.0
        %825 = vadd.xlane.f32.xlu0 %v824
        %v826 = vpop.xlane.xlu0 %825
        %v827 = vsel %vm556, %v819, 0.0
        %828 = vadd.xlane.f32.xlu0 %v827
        %v829 = vpop.xlane.xlu0 %828
        %v830 = vsel %vm556, %v820, 0.0
        %831 = vadd.xlane.f32.xlu0 %v830
        %v832 = vpop.xlane.xlu0 %831
        %v833 = vmul.f32 %v823, %v808
        %v834 = vmul.f32 %v826, %v808
        %v835 = vmul.f32 %v829, %v808
        %v836 = vmul.f32 %v832, %v808
        %v837 = vadd.f32 %v833, 1e-05
        %v838 = vadd.f32 %v834, 1e-05
        %v839 = vadd.f32 %v835, 1e-05
        %v840 = vadd.f32 %v836, 1e-05
        %v841 = vrsqrt.pop %v837
        %v842 = vmul.f32 %v841, %v837
        %v843 = vmul.f32 %v842, %v841
        %v844 = vmul.f32 0.5, %v843
        %v845 = vsub.f32 1.5, %v844
        %v846 = vmul.f32 %v841, %v845
        %vm847 = vweird.f32 %v837
        %vm848 = vweird.f32 %v841
        %vm849 = vmor %vm847, %vm848
        %v850 = vsel %vm849, %v841, %v846
        %v851 = vrsqrt.pop %v838
        %v852 = vmul.f32 %v851, %v838
        %v853 = vmul.f32 %v852, %v851
        %v854 = vmul.f32 0.5, %v853
        %v855 = vsub.f32 1.5, %v854
        %v856 = vmul.f32 %v851, %v855
        %vm857 = vweird.f32 %v838
        %vm858 = vweird.f32 %v851
        %vm859 = vmor %vm857, %vm858
        %v860 = vsel %vm859, %v851, %v856
        %v861 = vrsqrt.pop %v839
        %v862 = vmul.f32 %v861, %v839
        %v863 = vmul.f32 %v862, %v861
        %v864 = vmul.f32 0.5, %v863
        %v865 = vsub.f32 1.5, %v864
        %v866 = vmul.f32 %v861, %v865
        %vm867 = vweird.f32 %v839
        %vm868 = vweird.f32 %v861
        %vm869 = vmor %vm867, %vm868
        %v870 = vsel %vm869, %v861, %v866
        %v871 = vrsqrt.pop %v840
        %v872 = vmul.f32 %v871, %v840
        %v873 = vmul.f32 %v872, %v871
        %v874 = vmul.f32 0.5, %v873
        %v875 = vsub.f32 1.5, %v874
        %v876 = vmul.f32 %v871, %v875
        %vm877 = vweird.f32 %v840
        %vm878 = vweird.f32 %v871
        %vm879 = vmor %vm877, %vm878
        %v880 = vsel %vm879, %v871, %v876
        %v881 = vmul.f32 %v813, %v850
        %v882 = vmul.f32 %v814, %v860
        %v883 = vmul.f32 %v815, %v870
        %v884 = vmul.f32 %v816, %v880
        %v885 = vld [vmem:[%s5 + $0x3] sm:$0x1]
        %v886 = vperm.slane %v885, 0
        %v887 = vmul.f32 %v881, %v886
        %v888 = vmul.f32 %v882, %v886
        %v889 = vmul.f32 %v883, %v886
        %v890 = vmul.f32 %v884, %v886
        %v891 = vld [vmem:[%s5 + $0x4] sm:$0x1]
        %v892 = vperm.slane %v891, 0
        %v893 = vadd.f32 %v887, %v892
        %v894 = vadd.f32 %v888, %v892
        %v895 = vadd.f32 %v889, %v892
        %v896 = vadd.f32 %v890, %v892
        %897 = vst.msk [vmem:[%s284] sm:$0xff] %vm556, %v893
        %898 = vst.msk [vmem:[%s284 + $0x8] sm:$0xff] %vm556, %v894
        %899 = vst.msk [vmem:[%s284 + $0x10] sm:$0xff] %vm556, %v895
        %900 = vst.msk [vmem:[%s284 + $0x18] sm:$0xff] %vm556, %v896
        %s901 = sand.u32 %s180, 1
        %s902 = scalar_lea.sflag [#allocation5], %s901
        %s903 = sand.u32 %s180, 1
        %s904 = smul.addr %s903, 32
        %s905 = scalar_lea.vmem [#allocation4], %s904
        // Predicated region
        $region49: #{tpu_custom_call.1} parent=43 // pred_check
          %p906 = pneg %p190
        $region50: #{tpu_custom_call.1} parent=43 // pred_check_branch
          %908 = sbr.rel (%p906) target = $region52
        $region51: #{tpu_custom_call.1} parent=43 // pred_region
          %s909 = smul.u32 4, %s25
          %911 = vsyncadd %s902, 0
          %s912 = smul.addr %s24, 4
          %s913 = sadd.s32 %s909, %s912
          %s914 = smul.addr %s913, 8
          %s915 = scalar_lea.hbm %s6, %s914
          %s916 = sshll.u32 %s905, 4
          %s917 = int_to_ptr.vmem [resolvable:$true] %s916
          %s918 = sshll.u32 %s915, 4
          %s919 = int_to_ptr.hbm [resolvable:$true] %s918
          %924 = dma.vmem_to_hbm [thread:$0]  %s917, 512, %s919, %s902, 128, 128, 8
        $region52: #{tpu_custom_call.1} parent=43 // pred_fallthru
          _
      $region44: #{tpu_custom_call.1} parent=5 // pred_fallthru
        _
      %p925 = scmp.le.s32.totalorder 2, %s15
      // Predicated region
      $region53: #{tpu_custom_call.1} parent=5 // pred_check
        %p926 = pneg %p925
      $region54: #{tpu_custom_call.1} parent=5 // pred_check_branch
        %928 = sbr.rel (%p926) target = $region56
      $region55: #{tpu_custom_call.1} parent=5 // pred_region
        %s929 = ssub.s32 %s15, 2
        // Predicated region
        $region57: #{tpu_custom_call.1} parent=55 // pred_check
          %p930 = pneg %p196
        $region58: #{tpu_custom_call.1} parent=55 // pred_check_branch
          %932 = sbr.rel (%p930) target = $region60
        $region59: #{tpu_custom_call.1} parent=55 // pred_region
          %s933 = sand.u32 %s181, 1
          %s934 = scalar_lea.sflag [#allocation5], %s933
          %s935 = sand.u32 %s181, 1
          %s936 = smul.addr %s935, 32
          %s937 = scalar_lea.vmem [#allocation4], %s936
          %939 = dma.done %s934, 512
        $region60: #{tpu_custom_call.1} parent=55 // pred_fallthru
          _
      $region56: #{tpu_custom_call.1} parent=5 // pred_fallthru
        _
    $region6: #{tpu_custom_call.1} parent=1 // loop_footer
      %s19 = sadd.s32 1, %s15
    $region7: #{tpu_custom_call.1} parent=1 // loop_footer_branch
      %14 = sbr.rel target = $region3
    $region8: #{tpu_custom_call.1} parent=1 // loop_exit
      _
    %940 = vsyncpa [#allocation5], 1
    %s941 = scalar_lea.sflag [#allocation5], 1
    %942 = vsyncpa %s941, 1

</llo_original>
